<compile_context>
chip_gen: v6e
topology: v6e:2x2x1
jax: 0.10.0
libtpu: 0.0.40
codegen_flags: <defaults>
</compile_context>

<pallas_src>
import functools

import jax
import jax.numpy as jnp
from jax.experimental import pallas as pl
from jax.experimental.pallas import tpu as pltpu


def _focal_tversky_kernel(pred_ref, tgt_ref, out_ref,
                          pg_acc, sp_acc, ct_acc,
                          *, alpha, beta, gamma, num_classes, hw, tile_hw):
    k = pl.program_id(1)

    @pl.when(k == 0)
    def _init():
        pg_acc[...] = jnp.zeros_like(pg_acc)
        sp_acc[...] = jnp.zeros_like(sp_acc)
        ct_acc[...] = jnp.zeros_like(ct_acc)

    # Keep all hot math in f32: correct on v5e (no bf16 VALU/EUP) and safe for
    # the softmax; the upcast happens after the (possibly bf16) DMA.
    logits = pred_ref[0].astype(jnp.float32)   # (C, T)
    labels = tgt_ref[0].astype(jnp.int32)      # (1, T) — cheap row upcast

    # softmax over the class (sublane) axis, matching F.softmax(pred, dim=1).
    m = jnp.max(logits, axis=0, keepdims=True)              # (1, T)
    e = jnp.exp(logits - m)                                  # (C, T)
    z = jnp.sum(e, axis=0, keepdims=True)                    # (1, T)
    # EUP reciprocal + one Newton step: ~f32-exact, keeps the divide off the
    # VALU path and only touches the (1, T) row instead of the (C, T) tile.
    inv = pl.reciprocal(z, approx=True)
    inv = inv * (2.0 - z * inv)
    prob = e * inv                                           # (C, T)

    # one_hot(clamp(target, 0, C-1), C) expressed as a compare.
    t = jnp.clip(labels, 0, num_classes - 1)                 # (1, T)
    class_ids = jax.lax.broadcasted_iota(jnp.int32, prob.shape, 0)
    is_cls = class_ids == t                                  # (C, T) bool

    # Tail-tile lane mask (only materialized when HW doesn't divide the tile).
    if hw % tile_hw != 0:
        lane = jax.lax.broadcasted_iota(jnp.int32, (1, tile_hw), 1)
        valid = (k * tile_hw + lane) < hw                    # (1, T)
        prob_masked = jnp.where(valid, prob, 0.0)
        is_cls = jnp.logical_and(is_cls, valid)
    else:
        prob_masked = prob

    onehot = is_cls.astype(jnp.float32)
    # Per-tile in-register reductions (XLU); only (C, 1) sums hit VMEM scratch.
    pg_acc[...] += jnp.sum(jnp.where(is_cls, prob, 0.0), axis=1, keepdims=True)
    sp_acc[...] += jnp.sum(prob_masked, axis=1, keepdims=True)
    ct_acc[...] += jnp.sum(onehot, axis=1, keepdims=True)

    @pl.when(k == pl.num_programs(1) - 1)
    def _finalize():
        p_g = pg_acc[...]                                    # (C, 1)
        s_p = sp_acc[...]
        cnt = ct_acc[...]
        p_ng = s_p - p_g                                     # sum prob*(1-onehot)
        np_g = cnt - p_g                                     # sum (1-prob)*onehot
        tversky = p_g / (p_g + alpha * p_ng + beta * np_g + 1e-6)
        base = 1.0 - tversky
        inv_gamma = 1.0 / gamma
        if inv_gamma == 1.0:                                 # trace-time specialization
            loss = base
        else:
            loss = jnp.power(base, inv_gamma)
        out_ref[0] = loss                                    # (C, 1)


def _pick_hw_tile(hw, per_lane_bytes, target_block_bytes, vmem_budget_bytes):
    """HW tile sized by bytes: ~target_block_bytes of input per grid step,
    clamped so the double-buffered working set fits the VMEM budget, rounded
    to a lane multiple (128), and never larger than HW rounded up to 128."""
    hard_cap = max(128, vmem_budget_bytes // (2 * per_lane_bytes))
    tile = min(target_block_bytes // per_lane_bytes, hard_cap)
    tile = max(128, (tile // 128) * 128)
    hw_pad = -(-hw // 128) * 128
    return min(tile, hw_pad)


def focal_tversky_loss(pred, target, *, alpha=0.5, beta=0.5, gamma=1.0,
                       class_weight=None, loss_weight=1.0,
                       ignore_index=-100,
                       target_block_bytes=8 * 1024 * 1024):
    """Forward pass of FocalTverskyLoss. pred: (N, C, H, W) logits; target: (N, H, W)."""
    n, c, h, w = pred.shape
    hw = h * w

    # Keep pred's HBM dtype (bf16 stays bf16 -> half the DMA traffic) and the
    # target's narrow integer dtype; upcasts happen in-kernel once in VMEM.
    pred2 = pred.reshape(n, c, hw)
    if jnp.issubdtype(target.dtype, jnp.integer):
        tgt2 = target.reshape(n, 1, hw)
    else:
        tgt2 = target.reshape(n, 1, hw).astype(jnp.int32)

    pred_bytes = jnp.dtype(pred2.dtype).itemsize
    tgt_bytes = jnp.dtype(tgt2.dtype).itemsize
    per_lane_bytes = c * pred_bytes + tgt_bytes

    # 48 MiB working-set budget keeps the biggest safe tile on v7x (64 MiB
    # VMEM/TC) while still being far below the per-step overhead regime on
    # v5e/v6e (128 MiB).
    vmem_budget = 48 * 1024 * 1024
    tile_hw = _pick_hw_tile(hw, per_lane_bytes, target_block_bytes, vmem_budget)
    num_hw_tiles = pl.cdiv(hw, tile_hw)

    # Derive the scoped-VMEM limit from the actual double-buffered working set
    # (+ headroom) instead of a hard-coded cap; never ask for more than 56 MiB
    # so the same program compiles on v7x.
    live_bytes = 2 * tile_hw * per_lane_bytes
    vmem_limit = int(min(max(live_bytes + (8 << 20), 32 << 20), 56 << 20))

    kernel = functools.partial(
        _focal_tversky_kernel,
        alpha=float(alpha), beta=float(beta), gamma=float(gamma),
        num_classes=c, hw=hw, tile_hw=tile_hw)

    per_sample = pl.pallas_call(
        kernel,
        out_shape=jax.ShapeDtypeStruct((n, c, 1), jnp.float32),
        grid_spec=pltpu.PrefetchScalarGridSpec(
            num_scalar_prefetch=0,
            grid=(n, num_hw_tiles),                          # HW reduction axis last
            in_specs=[
                pl.BlockSpec((1, c, tile_hw), lambda i, k: (i, 0, k)),
                pl.BlockSpec((1, 1, tile_hw), lambda i, k: (i, 0, k)),
            ],
            # constant over k -> output block stays resident, written once at finalize
            out_specs=pl.BlockSpec((1, c, 1), lambda i, k: (i, 0, 0)),
            # Tiny (C, 1) running sums — no full-width accumulator RMW.
            scratch_shapes=[pltpu.VMEM((c, 1), jnp.float32) for _ in range(3)],
        ),
        compiler_params=pltpu.CompilerParams(
            dimension_semantics=("parallel", "arbitrary"),
            vmem_limit_bytes=vmem_limit),
    )(pred2, tgt2)                                           # (N, C, 1)

    # @weighted_loss on binary_focal_tversky_loss: reduction='mean' over batch.
    per_class = jnp.mean(per_sample[:, :, 0], axis=0)        # (C,)
    if class_weight is not None:
        per_class = per_class * jnp.asarray(class_weight, jnp.float32)
    # reference skips class index == ignore_index (never hit for -100)
    keep = jnp.arange(c) != ignore_index
    total = jnp.sum(jnp.where(keep, per_class, 0.0)) / c
    # outer @weighted_loss with reduction='mean' of a scalar is the scalar itself.
    return loss_weight * total


def _reference_focal_tversky(pred, target, alpha, beta, gamma,
                             loss_weight, ignore_index):
    """Pure-JAX reference mirroring the PyTorch module, for a sanity check."""
    n, c, h, w = pred.shape
    prob = jax.nn.softmax(pred.astype(jnp.float32), axis=1)
    onehot = jax.nn.one_hot(jnp.clip(target.astype(jnp.int32), 0, c - 1), c)  # (N,H,W,C)
    total = 0.0
    for i in range(c):
        if i != ignore_index:
            p = prob[:, i].reshape(n, -1)
            t = onehot[..., i].reshape(n, -1)
            p_g = jnp.sum(p * t, axis=1)
            p_ng = jnp.sum(p * (1 - t), axis=1)
            np_g = jnp.sum((1 - p) * t, axis=1)
            ratio = p_g / (p_g + alpha * p_ng + beta * np_g + 1e-6)
            total = total + jnp.mean(jnp.power(1.0 - ratio, 1.0 / gamma))
    return loss_weight * total / c


if __name__ == "__main__":
    key = jax.random.PRNGKey(0)
    k1, k2, k3, k4 = jax.random.split(key, 4)

    # --- case 1: default byte-sized tile (single tile, hw = 256) ------------
    N, C, H, W = 2, 4, 16, 16
    pred = jax.random.normal(k1, (N, C, H, W), dtype=jnp.float32)
    target = jax.random.randint(k2, (N, H, W), 0, C, dtype=jnp.int32)
    ref = _reference_focal_tversky(pred, target, 0.5, 0.5, 1.0, 1.0, -100)

    loss = focal_tversky_loss(pred, target, alpha=0.5, beta=0.5, gamma=1.0,
                              class_weight=None, loss_weight=1.0,
                              ignore_index=-100)
    loss = jax.block_until_ready(loss)
    assert jnp.allclose(loss, ref, rtol=1e-4, atol=1e-5), (loss, ref)

    # --- case 2: multi-tile accumulation, HW divisible by the tile ----------
    # Force tile_hw = 128 (2 tiles of 128 over hw = 256) via a tiny byte budget.
    small_budget = 128 * (C * 4 + 4)
    loss_tiled = focal_tversky_loss(pred, target, alpha=0.5, beta=0.5, gamma=1.0,
                                    class_weight=None, loss_weight=1.0,
                                    ignore_index=-100,
                                    target_block_bytes=small_budget)
    loss_tiled = jax.block_until_ready(loss_tiled)
    assert jnp.allclose(loss_tiled, ref, rtol=1e-4, atol=1e-5), (loss_tiled, ref)

    # --- case 3: ragged HW (150) -> cdiv grid + in-kernel tail masking -------
    H2, W2 = 15, 10
    pred_r = jax.random.normal(k3, (N, C, H2, W2), dtype=jnp.float32)
    target_r = jax.random.randint(k4, (N, H2, W2), 0, C, dtype=jnp.int32)
    ref_r = _reference_focal_tversky(pred_r, target_r, 0.5, 0.5, 1.0, 1.0, -100)

    loss_r = focal_tversky_loss(pred_r, target_r, alpha=0.5, beta=0.5, gamma=1.0,
                                class_weight=None, loss_weight=1.0,
                                ignore_index=-100,
                                target_block_bytes=small_budget)
    loss_r = jax.block_until_ready(loss_r)
    assert jnp.allclose(loss_r, ref_r, rtol=1e-4, atol=1e-5), (loss_r, ref_r)

    print("KERNEL_OK")
</pallas_src>

<mosaic_0001>
module attributes {stable_mosaic.version = 11 : i64} {
  func.func @_focal_tversky_kernel(%arg0: i32, %arg1: i32, %arg2: memref<1x4x256xf32, #tpu.memory_space<vmem>>, %arg3: memref<1x1x256xi32, #tpu.memory_space<vmem>>, %arg4: memref<1x4x1xf32, #tpu.memory_space<vmem>>, %arg5: memref<4x1xf32, #tpu.memory_space<vmem>>, %arg6: memref<4x1xf32, #tpu.memory_space<vmem>>, %arg7: memref<4x1xf32, #tpu.memory_space<vmem>>) attributes {dimension_semantics = [#tpu.dimension_semantics<parallel>, #tpu.dimension_semantics<arbitrary>], iteration_bounds = array<i64: 2, 1>, scalar_prefetch = 0 : i64, scratch_operands = 3 : i64, tpu.core_type = #tpu.core_type<tc>, window_params = [{transform_indices = @transform_0, window_bounds = array<i64: 1, 4, 256>}, {transform_indices = @transform_1, window_bounds = array<i64: 1, 1, 256>}, {transform_indices = @transform_2, window_bounds = array<i64: 1, 4, 1>}]} {
    %c0_i32 = arith.constant 0 : i32
    %0 = arith.cmpi eq, %arg1, %c0_i32 : i32
    %1 = arith.extui %0 : i1 to i32
    %c0_i32_0 = arith.constant 0 : i32
    %2 = arith.cmpi ne, %1, %c0_i32_0 : i32
    scf.if %2 {
      %cst_27 = arith.constant 0.000000e+00 : f32
      %50 = vector.broadcast %cst_27 : f32 to vector<4x1xf32>
      %c0_28 = arith.constant 0 : index
      %c0_29 = arith.constant 0 : index
      %51 = vector.load %arg5[%c0_28, %c0_29] : memref<4x1xf32, #tpu.memory_space<vmem>>, vector<4x1xf32>
      tpu.vector_store %arg5[%c0_28, %c0_29], %50 {strides = array<i32>} : memref<4x1xf32, #tpu.memory_space<vmem>>, vector<4x1xf32>,
      %cst_30 = arith.constant 0.000000e+00 : f32
      %52 = vector.broadcast %cst_30 : f32 to vector<4x1xf32>
      %c0_31 = arith.constant 0 : index
      %c0_32 = arith.constant 0 : index
      %53 = vector.load %arg6[%c0_31, %c0_32] : memref<4x1xf32, #tpu.memory_space<vmem>>, vector<4x1xf32>
      tpu.vector_store %arg6[%c0_31, %c0_32], %52 {strides = array<i32>} : memref<4x1xf32, #tpu.memory_space<vmem>>, vector<4x1xf32>,
      %cst_33 = arith.constant 0.000000e+00 : f32
      %54 = vector.broadcast %cst_33 : f32 to vector<4x1xf32>
      %c0_34 = arith.constant 0 : index
      %c0_35 = arith.constant 0 : index
      %55 = vector.load %arg7[%c0_34, %c0_35] : memref<4x1xf32, #tpu.memory_space<vmem>>, vector<4x1xf32>
      tpu.vector_store %arg7[%c0_34, %c0_35], %54 {strides = array<i32>} : memref<4x1xf32, #tpu.memory_space<vmem>>, vector<4x1xf32>,
    } else {
    }
    %c0 = arith.constant 0 : index
    %c0_1 = arith.constant 0 : index
    %c0_2 = arith.constant 0 : index
    %3 = vector.load %arg2[%c0, %c0_1, %c0_2] : memref<1x4x256xf32, #tpu.memory_space<vmem>>, vector<1x4x256xf32>
    %4 = vector.shape_cast %3 : vector<1x4x256xf32> to vector<4x256xf32>
    %c0_3 = arith.constant 0 : index
    %c0_4 = arith.constant 0 : index
    %c0_5 = arith.constant 0 : index
    %5 = vector.load %arg3[%c0_3, %c0_4, %c0_5] : memref<1x1x256xi32, #tpu.memory_space<vmem>>, vector<1x1x256xi32>
    %6 = vector.shape_cast %5 : vector<1x1x256xi32> to vector<1x256xi32>
    %cst = arith.constant dense<0xFF800000> : vector<256xf32>
    %7 = vector.multi_reduction <maximumf>, %4, %cst [0] : vector<4x256xf32> to vector<256xf32>
    %8 = vector.shape_cast %7 : vector<256xf32> to vector<1x256xf32>
    %9 = vector.broadcast %8 : vector<1x256xf32> to vector<4x256xf32>
    %10 = arith.subf %4, %9 : vector<4x256xf32>
    %11 = math.exp %10 : vector<4x256xf32>
    %cst_6 = arith.constant dense<0.000000e+00> : vector<256xf32>
    %12 = vector.multi_reduction <add>, %11, %cst_6 [0] : vector<4x256xf32> to vector<256xf32>
    %13 = vector.shape_cast %12 : vector<256xf32> to vector<1x256xf32>
    %14 = tpu.reciprocal %13 {approx = true} : vector<1x256xf32> -> vector<1x256xf32>
    %15 = arith.mulf %13, %14 : vector<1x256xf32>
    %cst_7 = arith.constant 2.000000e+00 : f32
    %16 = vector.broadcast %cst_7 : f32 to vector<1x256xf32>
    %17 = arith.subf %16, %15 : vector<1x256xf32>
    %18 = arith.mulf %14, %17 : vector<1x256xf32>
    %19 = vector.broadcast %18 : vector<1x256xf32> to vector<4x256xf32>
    %20 = arith.mulf %11, %19 : vector<4x256xf32>
    %c0_i32_8 = arith.constant 0 : i32
    %c3_i32 = arith.constant 3 : i32
    %21 = vector.broadcast %c0_i32_8 : i32 to vector<1x256xi32>
    %22 = arith.maxsi %21, %6 : vector<1x256xi32>
    %23 = vector.broadcast %c3_i32 : i32 to vector<1x256xi32>
    %24 = arith.minsi %23, %22 : vector<1x256xi32>
    %25 = tpu.iota {dimensions = array<i32: 0>} : vector<4x256xi32>
    %26 = vector.broadcast %24 : vector<1x256xi32> to vector<4x256xi32>
    %27 = arith.cmpi eq, %25, %26 : vector<4x256xi32>
    %28 = arith.extui %27 : vector<4x256xi1> to vector<4x256xi32>
    %29 = arith.sitofp %28 : vector<4x256xi32> to vector<4x256xf32>
    %c0_9 = arith.constant 0 : index
    %c0_10 = arith.constant 0 : index
    %30 = vector.load %arg5[%c0_9, %c0_10] : memref<4x1xf32, #tpu.memory_space<vmem>>, vector<4x1xf32>
    %cst_11 = arith.constant 0.000000e+00 : f32
    %31 = vector.broadcast %cst_11 : f32 to vector<4x256xf32>
    %32 = arith.select %27, %20, %31 : vector<4x256xi1>, vector<4x256xf32>
    %cst_12 = arith.constant dense<0.000000e+00> : vector<4xf32>
    %33 = vector.multi_reduction <add>, %32, %cst_12 [1] : vector<4x256xf32> to vector<4xf32>
    %34 = vector.shape_cast %33 : vector<4xf32> to vector<4x1xf32>
    %35 = arith.addf %30, %34 : vector<4x1xf32>
    %c0_13 = arith.constant 0 : index
    %c0_14 = arith.constant 0 : index
    %36 = vector.load %arg5[%c0_13, %c0_14] : memref<4x1xf32, #tpu.memory_space<vmem>>, vector<4x1xf32>
    tpu.vector_store %arg5[%c0_13, %c0_14], %35 {strides = array<i32>} : memref<4x1xf32, #tpu.memory_space<vmem>>, vector<4x1xf32>,
    %c0_15 = arith.constant 0 : index
    %c0_16 = arith.constant 0 : index
    %37 = vector.load %arg6[%c0_15, %c0_16] : memref<4x1xf32, #tpu.memory_space<vmem>>, vector<4x1xf32>
    %cst_17 = arith.constant dense<0.000000e+00> : vector<4xf32>
    %38 = vector.multi_reduction <add>, %20, %cst_17 [1] : vector<4x256xf32> to vector<4xf32>
    %39 = vector.shape_cast %38 : vector<4xf32> to vector<4x1xf32>
    %40 = arith.addf %37, %39 : vector<4x1xf32>
    %c0_18 = arith.constant 0 : index
    %c0_19 = arith.constant 0 : index
    %41 = vector.load %arg6[%c0_18, %c0_19] : memref<4x1xf32, #tpu.memory_space<vmem>>, vector<4x1xf32>
    tpu.vector_store %arg6[%c0_18, %c0_19], %40 {strides = array<i32>} : memref<4x1xf32, #tpu.memory_space<vmem>>, vector<4x1xf32>,
    %c0_20 = arith.constant 0 : index
    %c0_21 = arith.constant 0 : index
    %42 = vector.load %arg7[%c0_20, %c0_21] : memref<4x1xf32, #tpu.memory_space<vmem>>, vector<4x1xf32>
    %cst_22 = arith.constant dense<0.000000e+00> : vector<4xf32>
    %43 = vector.multi_reduction <add>, %29, %cst_22 [1] : vector<4x256xf32> to vector<4xf32>
    %44 = vector.shape_cast %43 : vector<4xf32> to vector<4x1xf32>
    %45 = arith.addf %42, %44 : vector<4x1xf32>
    %c0_23 = arith.constant 0 : index
    %c0_24 = arith.constant 0 : index
    %46 = vector.load %arg7[%c0_23, %c0_24] : memref<4x1xf32, #tpu.memory_space<vmem>>, vector<4x1xf32>
    tpu.vector_store %arg7[%c0_23, %c0_24], %45 {strides = array<i32>} : memref<4x1xf32, #tpu.memory_space<vmem>>, vector<4x1xf32>,
    %c0_i32_25 = arith.constant 0 : i32
    %47 = arith.cmpi eq, %arg1, %c0_i32_25 : i32
    %48 = arith.extui %47 : i1 to i32
    %c0_i32_26 = arith.constant 0 : i32
    %49 = arith.cmpi ne, %48, %c0_i32_26 : i32
    scf.if %49 {
      %c0_27 = arith.constant 0 : index
      %c0_28 = arith.constant 0 : index
      %50 = vector.load %arg5[%c0_27, %c0_28] : memref<4x1xf32, #tpu.memory_space<vmem>>, vector<4x1xf32>
      %c0_29 = arith.constant 0 : index
      %c0_30 = arith.constant 0 : index
      %51 = vector.load %arg6[%c0_29, %c0_30] : memref<4x1xf32, #tpu.memory_space<vmem>>, vector<4x1xf32>
      %c0_31 = arith.constant 0 : index
      %c0_32 = arith.constant 0 : index
      %52 = vector.load %arg7[%c0_31, %c0_32] : memref<4x1xf32, #tpu.memory_space<vmem>>, vector<4x1xf32>
      %53 = arith.subf %51, %50 : vector<4x1xf32>
      %54 = arith.subf %52, %50 : vector<4x1xf32>
      %cst_33 = arith.constant 5.000000e-01 : f32
      %55 = vector.broadcast %cst_33 : f32 to vector<4x1xf32>
      %56 = arith.mulf %55, %53 : vector<4x1xf32>
      %57 = arith.addf %50, %56 : vector<4x1xf32>
      %cst_34 = arith.constant 5.000000e-01 : f32
      %58 = vector.broadcast %cst_34 : f32 to vector<4x1xf32>
      %59 = arith.mulf %58, %54 : vector<4x1xf32>
      %60 = arith.addf %57, %59 : vector<4x1xf32>
      %cst_35 = arith.constant 9.99999997E-7 : f32
      %61 = vector.broadcast %cst_35 : f32 to vector<4x1xf32>
      %62 = arith.addf %60, %61 : vector<4x1xf32>
      %63 = arith.divf %50, %62 : vector<4x1xf32>
      %cst_36 = arith.constant 1.000000e+00 : f32
      %64 = vector.broadcast %cst_36 : f32 to vector<4x1xf32>
      %65 = arith.subf %64, %63 : vector<4x1xf32>
      %c0_37 = arith.constant 0 : index
      %c0_38 = arith.constant 0 : index
      %c0_39 = arith.constant 0 : index
      %66 = vector.load %arg4[%c0_37, %c0_38, %c0_39] : memref<1x4x1xf32, #tpu.memory_space<vmem>>, vector<1x4x1xf32>
      %67 = vector.shape_cast %66 : vector<1x4x1xf32> to vector<4x1xf32>
      %68 = vector.shape_cast %65 : vector<4x1xf32> to vector<1x4x1xf32>
      tpu.vector_store %arg4[%c0_37, %c0_38, %c0_39], %68 {strides = array<i32>} : memref<1x4x1xf32, #tpu.memory_space<vmem>>, vector<1x4x1xf32>,
    } else {
    }
    return
  }
  func.func @transform_0(%arg0: i32, %arg1: i32) -> (i32, i32, i32) {
    %c0_i32 = arith.constant 0 : i32
    %c0_i32_0 = arith.constant 0 : i32
    return %arg0, %c0_i32, %arg1 : i32, i32, i32
  }
  func.func @transform_1(%arg0: i32, %arg1: i32) -> (i32, i32, i32) {
    %c0_i32 = arith.constant 0 : i32
    %c0_i32_0 = arith.constant 0 : i32
    return %arg0, %c0_i32, %arg1 : i32, i32, i32
  }
  func.func @transform_2(%arg0: i32, %arg1: i32) -> (i32, i32, i32) {
    %c0_i32 = arith.constant 0 : i32
    %c0_i32_0 = arith.constant 0 : i32
    %c0_i32_1 = arith.constant 0 : i32
    return %arg0, %c0_i32, %c0_i32_0 : i32, i32, i32
  }
}

</mosaic_0001>

<llo_original>
// kernel: tpu_custom_call.1
$region0: #{tpu_custom_call.1}
  #allocation0 [shape = 'u32[]', space=smem, size = 0x4, offset = 0x4, fixed_abs, tag = 'smem constant byte address 0x4 - core index']
  #allocation1 [shape = 'u32[144,128]{1,0:T(1,128)}', space=vmem, size = 0x12000, scoped, tag = 'internal scratch']
  #allocation2 [shape = 'f32[4,1]{1,0:T(4,128)}', space=vmem, size = 0x800, scoped, tag = 'scratch operand']
  #allocation3 [shape = 'f32[4,1]{1,0:T(4,128)}', space=vmem, size = 0x800, scoped, tag = 'scratch operand']
  #allocation4 [shape = 'f32[4,1]{1,0:T(4,128)}', space=vmem, size = 0x800, scoped, tag = 'scratch operand']
  %s0 = inlined_call_operand.hbm [shape: f32[2,4,256], index: 0, kind: input, shape index: {}]
  %s1 = inlined_call_operand.hbm [shape: s32[2,1,256], index: 1, kind: input, shape index: {}]
  %s2 = inlined_call_operand.vmem [shape: f32[2,4,1], index: 2, kind: output, shape index: {}]
  %s3 = sld [smem:[#allocation0]]
  $region57: #{tpu_custom_call.1} parent=0
    _
  %s5 = ssub.s32 1, %s3
  %s6 = scalar_select 0, %s5, %s3
  $region1: #{tpu_custom_call.1} parent=0
    #allocation5 [shape = 'u8[8192]{0}', space=vmem, size = 0x2000, scoped, tag = 'input window, operand 0']
    #allocation6 [shape = 's32[2]{0}', space=sflag, size = 0x8, scoped, tag = 'scoped memory for tpu_custom_call.1']
    #allocation7 [shape = 'u8[2048]{0}', space=vmem, size = 0x800, scoped, tag = 'input window, operand 1']
    #allocation8 [shape = 's32[2]{0}', space=sflag, size = 0x8, scoped, tag = 'scoped memory for tpu_custom_call.1']
    %7 = vsyncpa [#allocation6], 0
    %s8 = scalar_lea.sflag [#allocation6], 1
    %9 = vsyncpa %s8, 0
    %10 = vsyncpa [#allocation8], 0
    %s11 = scalar_lea.sflag [#allocation8], 1
    %12 = vsyncpa %s11, 0
    loop: start=0, step=1, limit=4
    $region2: #{tpu_custom_call.1} parent=1 // loop_pre_header
      _
    $region3: #{tpu_custom_call.1} parent=1 // loop_header
      %s14 = sphi 0, %s18
      %p15 = scmp.ge.s32.totalorder %s14, 4
      %s21 = sphi 0, %s33
      %s22 = sphi 0, %s29
      %s23 = sphi 0, %s21
      %s24 = sphi 0, %s22
      %s25 = sphi 0, %s23
      %s26 = sphi 0, %s24
      %s38 = sphi 0, %s40
      %s41 = sphi 0, %s38
      %s42 = sphi 0, %s41
      %s58 = sphi 0, %s42
      %s66 = sphi 0, %s68
      %s69 = sphi 0, %s66
      %s70 = sphi 0, %s69
      %s86 = sphi 0, %s70
      %s92 = sphi 0, %s94
      %s95 = sphi 0, %s92
      %s96 = sphi 0, %s95
      %s112 = sphi 0, %s96
    $region4: #{tpu_custom_call.1} parent=1 // loop_header_branch
      %17 = sbr.rel (%p15) target = $region8
    $region5: #{tpu_custom_call.1} parent=1 // loop_body
      %s19 = ssub.s32 %s14, 1
      %s20 = ssub.s32 %s14, 2
      %s27 = sadd.s32 1, %s22
      %p28 = scmp.ge.s32.totalorder %s27, 1
      %s29 = scalar_select %p28, 0, %s27
      %s30 = sadd.s32 1, %s21
      %s31 = scalar_select %p28, %s30, %s21
      %p32 = scmp.ge.s32.totalorder %s31, 2
      %s33 = scalar_select %p32, 0, %s31
      %s34 = ssub.s32 %s21, %s33
      %s35 = ssub.s32 %s22, %s29
      %s36 = sor.u32 %s34, %s35
      %p37 = scmp.eq.s32.totalorder %s36, 0
      %s39 = sadd.s32 %s38, 1
      %s40 = scalar_select %p37, %s38, %s39
      %p43 = pneg %p37
      %p44 = scmp.eq.s32.totalorder %s14, 1
      %p45 = por %p43, %p44
      %p46 = scmp.ne.s32.totalorder %s38, %s41
      %p47 = scmp.eq.s32.totalorder %s14, 0
      %p48 = por %p46, %p47
      %p49 = scmp.ne.s32.totalorder %s38, %s41
      %p50 = scmp.eq.s32.totalorder %s19, 1
      %p51 = por %p49, %p50
      %p52 = scmp.ne.s32.totalorder %s41, %s42
      %p53 = scmp.eq.s32.totalorder %s19, 0
      %p54 = por %p52, %p53
      %p55 = scmp.ne.s32.totalorder %s41, %s42
      %p56 = scmp.eq.s32.totalorder %s20, 1
      %p57 = por %p55, %p56
      %p59 = scmp.ne.s32.totalorder %s42, %s58
      %p60 = scmp.eq.s32.totalorder %s20, 0
      %p61 = por %p59, %p60
      %s62 = ssub.s32 %s21, %s33
      %s63 = ssub.s32 %s22, %s29
      %s64 = sor.u32 %s62, %s63
      %p65 = scmp.eq.s32.totalorder %s64, 0
      %s67 = sadd.s32 %s66, 1
      %s68 = scalar_select %p65, %s66, %s67
      %p71 = pneg %p65
      %p72 = scmp.eq.s32.totalorder %s14, 1
      %p73 = por %p71, %p72
      %p74 = scmp.ne.s32.totalorder %s66, %s69
      %p75 = scmp.eq.s32.totalorder %s14, 0
      %p76 = por %p74, %p75
      %p77 = scmp.ne.s32.totalorder %s66, %s69
      %p78 = scmp.eq.s32.totalorder %s19, 1
      %p79 = por %p77, %p78
      %p80 = scmp.ne.s32.totalorder %s69, %s70
      %p81 = scmp.eq.s32.totalorder %s19, 0
      %p82 = por %p80, %p81
      %p83 = scmp.ne.s32.totalorder %s69, %s70
      %p84 = scmp.eq.s32.totalorder %s20, 1
      %p85 = por %p83, %p84
      %p87 = scmp.ne.s32.totalorder %s70, %s86
      %p88 = scmp.eq.s32.totalorder %s20, 0
      %p89 = por %p87, %p88
      %s90 = ssub.s32 %s21, %s33
      %p91 = scmp.eq.s32.totalorder %s90, 0
      %s93 = sadd.s32 %s92, 1
      %s94 = scalar_select %p91, %s92, %s93
      %p97 = pneg %p91
      %p98 = scmp.eq.s32.totalorder %s14, 1
      %p99 = por %p97, %p98
      %p100 = scmp.ne.s32.totalorder %s92, %s95
      %p101 = scmp.eq.s32.totalorder %s14, 0
      %p102 = por %p100, %p101
      %p103 = scmp.ne.s32.totalorder %s92, %s95
      %p104 = scmp.eq.s32.totalorder %s19, 1
      %p105 = por %p103, %p104
      %p106 = scmp.ne.s32.totalorder %s95, %s96
      %p107 = scmp.eq.s32.totalorder %s19, 0
      %p108 = por %p106, %p107
      %p109 = scmp.ne.s32.totalorder %s95, %s96
      %p110 = scmp.eq.s32.totalorder %s20, 1
      %p111 = por %p109, %p110
      %p113 = scmp.ne.s32.totalorder %s96, %s112
      %p114 = scmp.eq.s32.totalorder %s20, 0
      %p115 = por %p113, %p114
      %p116 = scmp.le.s32.totalorder 1, %s14
      %p117 = scmp.lt.s32.totalorder %s14, 3
      %p118 = pnand %p116, %p117
      %p119 = pneg %p118
      // Predicated region
      $region9: #{tpu_custom_call.1} parent=5 // pred_check
        _
      $region10: #{tpu_custom_call.1} parent=5 // pred_check_branch
        %121 = sbr.rel (%p118) target = $region12
      $region11: #{tpu_custom_call.1} parent=5 // pred_region
        %s122 = ssub.s32 %s14, 1
      $region12: #{tpu_custom_call.1} parent=5 // pred_fallthru
        _
      %p123 = scmp.lt.s32.totalorder %s14, 2
      // Predicated region
      $region13: #{tpu_custom_call.1} parent=5 // pred_check
        %p124 = pneg %p123
      $region14: #{tpu_custom_call.1} parent=5 // pred_check_branch
        %126 = sbr.rel (%p124) target = $region16
      $region15: #{tpu_custom_call.1} parent=5 // pred_region
        // Predicated region
        $region17: #{tpu_custom_call.1} parent=15 // pred_check
          %p127 = pneg %p48
        $region18: #{tpu_custom_call.1} parent=15 // pred_check_branch
          %129 = sbr.rel (%p127) target = $region20
        $region19: #{tpu_custom_call.1} parent=15 // pred_region
          %s130 = sand.u32 %s38, 1
          %s131 = scalar_lea.sflag [#allocation6], %s130
          %s132 = sand.u32 %s38, 1
          %s133 = smul.addr %s132, 8
          %s134 = scalar_lea.vmem [#allocation5], %s133
          %s135 = smul.u32 2, %s22
          %s137 = ssub.s32 128, 128
          %138 = vsyncadd %s131, %s137
          %s139 = smul.addr %s21, 2
          %s140 = sadd.s32 %s135, %s139
          %s141 = smul.addr %s140, 64
          %s142 = scalar_lea.hbm %s0, %s141
          %s144 = sshll.u32 %s134, 4
          %s145 = int_to_ptr.vmem [resolvable:$true] %s144
          %147 = dma.hbm_to_vmem [thread:$0]  %s142, 128, %s145, %s131
        $region20: #{tpu_custom_call.1} parent=15 // pred_fallthru
          _
        // Predicated region
        $region21: #{tpu_custom_call.1} parent=15 // pred_check
          %p148 = pneg %p76
        $region22: #{tpu_custom_call.1} parent=15 // pred_check_branch
          %150 = sbr.rel (%p148) target = $region24
        $region23: #{tpu_custom_call.1} parent=15 // pred_region
          %s151 = sand.u32 %s66, 1
          %s152 = scalar_lea.sflag [#allocation8], %s151
          %s153 = sand.u32 %s66, 1
          %s154 = smul.addr %s153, 2
          %s155 = scalar_lea.vmem [#allocation7], %s154
          %s156 = smul.u32 2, %s22
          %s158 = ssub.s32 32, 32
          %159 = vsyncadd %s152, %s158
          %s160 = smul.addr %s21, 2
          %s161 = sadd.s32 %s156, %s160
          %s162 = smul.addr %s161, 16
          %s163 = scalar_lea.hbm %s1, %s162
          %s165 = sshll.u32 %s155, 4
          %s166 = int_to_ptr.vmem [resolvable:$true] %s165
          %168 = dma.hbm_to_vmem [thread:$0]  %s163, 32, %s166, %s152
        $region24: #{tpu_custom_call.1} parent=15 // pred_fallthru
          _
      $region16: #{tpu_custom_call.1} parent=5 // pred_fallthru
        _
      %p169 = scmp.le.s32.totalorder 1, %s14
      %p170 = scmp.lt.s32.totalorder %s14, 3
      %p171 = pnand %p169, %p170
      %p172 = pneg %p171
      // Predicated region
      $region25: #{tpu_custom_call.1} parent=5 // pred_check
        _
      $region26: #{tpu_custom_call.1} parent=5 // pred_check_branch
        %174 = sbr.rel (%p171) target = $region28
      $region27: #{tpu_custom_call.1} parent=5 // pred_region
        %s175 = ssub.s32 %s14, 1
        %s176 = sand.u32 %s41, 1
        %s177 = scalar_lea.sflag [#allocation6], %s176
        %s178 = sand.u32 %s41, 1
        %s179 = smul.addr %s178, 8
        %s180 = scalar_lea.vmem [#allocation5], %s179
        // Predicated region
        $region29: #{tpu_custom_call.1} parent=27 // pred_check
          %p181 = pneg %p54
        $region30: #{tpu_custom_call.1} parent=27 // pred_check_branch
          %183 = sbr.rel (%p181) target = $region32
        $region31: #{tpu_custom_call.1} parent=27 // pred_region
          %184 = dma.done %s177, 128
        $region32: #{tpu_custom_call.1} parent=27 // pred_fallthru
          _
        %s185 = sand.u32 %s69, 1
        %s186 = scalar_lea.sflag [#allocation8], %s185
        %s187 = sand.u32 %s69, 1
        %s188 = smul.addr %s187, 2
        %s189 = scalar_lea.vmem [#allocation7], %s188
        // Predicated region
        $region33: #{tpu_custom_call.1} parent=27 // pred_check
          %p190 = pneg %p82
        $region34: #{tpu_custom_call.1} parent=27 // pred_check_branch
          %192 = sbr.rel (%p190) target = $region36
        $region35: #{tpu_custom_call.1} parent=27 // pred_region
          %193 = dma.done %s186, 32
        $region36: #{tpu_custom_call.1} parent=27 // pred_fallthru
          _
        %s194 = sand.u32 %s41, 1
        %s195 = scalar_lea.sflag [#allocation6], %s194
        %s196 = sand.u32 %s41, 1
        %s197 = smul.addr %s196, 8
        %s198 = scalar_lea.vmem [#allocation5], %s197
        %p199 = pneg %p54
        %p200 = pneg %p51
        %s201 = sand.u32 %s69, 1
        %s202 = scalar_lea.sflag [#allocation8], %s201
        %s203 = sand.u32 %s69, 1
        %s204 = smul.addr %s203, 2
        %s205 = scalar_lea.vmem [#allocation7], %s204
        %p206 = pneg %p82
        %p207 = pneg %p79
        %p208 = pneg %p108
        %p209 = pneg %p105
        %p210 = scmp.lt.s32.totalorder %s23, 1
        %s211 = scalar_select %p210, %s23, 1
        %s212 = smul.addr %s211, 4
        %s213 = scalar_lea.vmem %s2, %s212
        %s214 = smul.u32 2, %s24
        %s215 = smul.u32 2, %s24
        %p216 = scmp.lt.s32.totalorder %s23, 1
        %s217 = scalar_select %p216, %s23, 1
        %s218 = smul.addr %s217, 4
        %s219 = scalar_lea.vmem %s2, %s218
        %p220 = scmp.eq.s32.totalorder %s24, 0
        // Predicated region
        $region37: #{tpu_custom_call.1} parent=27 // pred_check
          %p221 = pneg %p220
        $region38: #{tpu_custom_call.1} parent=27 // pred_check_branch
          %223 = sbr.rel (%p221) target = $region40
        $region39: #{tpu_custom_call.1} parent=27 // pred_region
          %vm224 = vcmask 3072
          %225 = vst.msk [vmem:[#allocation2] sm:$0xf] %vm224, 0.0
          %226 = vst.msk [vmem:[#allocation3] sm:$0xf] %vm224, 0.0
          %227 = vst.msk [vmem:[#allocation4] sm:$0xf] %vm224, 0.0
        $region40: #{tpu_custom_call.1} parent=27 // pred_fallthru
          _
        %v228 = vld [vmem:[%s180] sm:$0xff]
        %v229 = vld [vmem:[%s189] sm:$0x3]
        %v231 = vcombine.high %v228, %v228
        %vm233 = vcmask 1043456
        %v234 = vsel %vm233, %v228, -inf
        %v235 = vrot.slane %v234, 4
        %v236 = vmax.f32 %v234, %v235
        %v237 = vrot.slane %v236, 2
        %v238 = vmax.f32 %v236, %v237
        %v239 = vrot.slane %v238, 1
        %v240 = vmax.f32 %v238, %v239
        %v241 = vsel %vm233, %v231, -inf
        %v242 = vrot.slane %v241, 4
        %v243 = vmax.f32 %v241, %v242
        %v244 = vrot.slane %v243, 2
        %v245 = vmax.f32 %v243, %v244
        %v246 = vrot.slane %v245, 1
        %v247 = vmax.f32 %v245, %v246
        %v250 = vcombine.low %v240, %v247
        %v252 = vsub.f32 %v228, %v250
        %v253 = vmul.f32 %v252, 1.442695
        %v254 = vpow.pop %v253
        %v256 = vcombine.high %v254, %v254
        %v258 = vsel %vm233, %v254, 0.0
        %v259 = vrot.slane %v258, 4
        %v260 = vadd.f32 %v258, %v259
        %v261 = vrot.slane %v260, 2
        %v262 = vadd.f32 %v260, %v261
        %v263 = vrot.slane %v262, 1
        %v264 = vadd.f32 %v262, %v263
        %v265 = vsel %vm233, %v256, 0.0
        %v266 = vrot.slane %v265, 4
        %v267 = vadd.f32 %v265, %v266
        %v268 = vrot.slane %v267, 2
        %v269 = vadd.f32 %v267, %v268
        %v270 = vrot.slane %v269, 1
        %v271 = vadd.f32 %v269, %v270
        %v272 = vrcp.pop %v264
        %v273 = vrcp.pop %v271
        %v274 = vmul.f32 %v264, %v272
        %v275 = vmul.f32 %v271, %v273
        %v276 = vsub.f32 2.0, %v274
        %v277 = vsub.f32 2.0, %v275
        %v278 = vmul.f32 %v272, %v276
        %v279 = vmul.f32 %v273, %v277
        %v282 = vcombine.low %v278, %v279
        %v284 = vmul.f32 %v254, %v282
        %vm285 = vcmp.gt.s32.totalorder %v229, 0
        %v286 = vsel %vm285, %v229, 0
        %vm287 = vcmp.lt.s32.totalorder %v286, 3
        %v288 = vsel %vm287, %v286, 3
        %v289 = vlaneseq
        %v290 = vshrl.u32 %v289, 7
        %v291 = vlaneseq
        %v292 = vshrl.u32 %v291, 7
        %v293 = vsub.s32 0, %v292
        %v294 = vrot.slane %v288, %v293
        %v295 = vlaneseq
        %v296 = vshrl.u32 %v295, 7
        %v297 = vsub.s32 1, %v296
        %v298 = vrot.slane %v288, %v297
        %vm299 = vcmp.eq.s32.totalorder %v290, %v294
        %vm300 = vcmp.eq.s32.totalorder %v290, %v298
        %v301 = vsel %vm299, 1, 0
        %v302 = vsel %vm300, 1, 0
        %v303 = vcvt.s32.f32 %v301
        %v304 = vcvt.s32.f32 %v302
        %v305 = vld [vmem:[#allocation2] sm:$0xf]
        %v307 = vcombine.high %v284, %v284
        %v309 = vsel %vm299, %v284, 0.0
        %v310 = vsel %vm300, %v307, 0.0
        %v311 = vsel %vm233, %v309, 0.0
        %v312 = vsel %vm233, %v310, 0.0
        %v313 = vadd.f32 %v311, %v312
        %314 = vadd.xlane.f32.xlu0 %v313
        %v315 = vpop.xlane.xlu0 %314
        %v316 = vadd.f32 %v305, %v315
        %vm317 = vcmask 3072
        %318 = vst.msk [vmem:[#allocation2] sm:$0xf] %vm317, %v316
        %v319 = vld [vmem:[#allocation3] sm:$0xf]
        %v320 = vsel %vm233, %v284, 0.0
        %v321 = vsel %vm233, %v307, 0.0
        %v322 = vadd.f32 %v320, %v321
        %323 = vadd.xlane.f32.xlu0 %v322
        %v324 = vpop.xlane.xlu0 %323
        %v325 = vadd.f32 %v319, %v324
        %326 = vst.msk [vmem:[#allocation3] sm:$0xf] %vm317, %v325
        %v327 = vld [vmem:[#allocation4] sm:$0xf]
        %v328 = vsel %vm233, %v303, 0.0
        %v329 = vsel %vm233, %v304, 0.0
        %v330 = vadd.f32 %v328, %v329
        %331 = vadd.xlane.f32.xlu0 %v330
        %v332 = vpop.xlane.xlu0 %331
        %v333 = vadd.f32 %v327, %v332
        %334 = vst.msk [vmem:[#allocation4] sm:$0xf] %vm317, %v333
        // Predicated region
        $region41: #{tpu_custom_call.1} parent=27 // pred_check
          %p335 = pneg %p220
        $region42: #{tpu_custom_call.1} parent=27 // pred_check_branch
          %337 = sbr.rel (%p335) target = $region44
        $region43: #{tpu_custom_call.1} parent=27 // pred_region
          %v338 = vld [vmem:[#allocation2] sm:$0xf]
          %v339 = vld [vmem:[#allocation3] sm:$0xf]
          %v340 = vld [vmem:[#allocation4] sm:$0xf]
          %v341 = vsub.f32 %v339, %v338
          %v342 = vsub.f32 %v340, %v338
          %v343 = vmul.f32 %v341, 0.5
          %v344 = vadd.f32 %v338, %v343
          %v345 = vmul.f32 %v342, 0.5
          %v346 = vadd.f32 %v344, %v345
          %v347 = vadd.f32 %v346, 1e-06
          %v348 = vrcp.pop %v347
          %v349 = vmul.f32 %v338, %v348
          %v350 = vsub.f32 1.0, %v349
          %351 = vst.msk [vmem:[%s219] sm:$0xf] %vm317, %v350
        $region44: #{tpu_custom_call.1} parent=27 // pred_fallthru
          _
        %p352 = scmp.lt.s32.totalorder %s23, 1
        %s353 = scalar_select %p352, %s23, 1
        %s354 = smul.addr %s353, 4
        %s355 = scalar_lea.vmem %s2, %s354
        // Predicated region
        $region45: #{tpu_custom_call.1} parent=27 // pred_check
          %p356 = pneg %p105
        $region46: #{tpu_custom_call.1} parent=27 // pred_check_branch
          %358 = sbr.rel (%p356) target = $region48
        $region47: #{tpu_custom_call.1} parent=27 // pred_region
          _
        $region48: #{tpu_custom_call.1} parent=27 // pred_fallthru
          _
      $region28: #{tpu_custom_call.1} parent=5 // pred_fallthru
        _
      %p359 = scmp.le.s32.totalorder 2, %s14
      // Predicated region
      $region49: #{tpu_custom_call.1} parent=5 // pred_check
        %p360 = pneg %p359
      $region50: #{tpu_custom_call.1} parent=5 // pred_check_branch
        %362 = sbr.rel (%p360) target = $region52
      $region51: #{tpu_custom_call.1} parent=5 // pred_region
        %s363 = ssub.s32 %s14, 2
        // Predicated region
        $region53: #{tpu_custom_call.1} parent=51 // pred_check
          %p364 = pneg %p111
        $region54: #{tpu_custom_call.1} parent=51 // pred_check_branch
          %366 = sbr.rel (%p364) target = $region56
        $region55: #{tpu_custom_call.1} parent=51 // pred_region
          %p367 = scmp.lt.s32.totalorder %s25, 1
          %s368 = scalar_select %p367, %s25, 1
          %s369 = smul.addr %s368, 4
          %s370 = scalar_lea.vmem %s2, %s369
        $region56: #{tpu_custom_call.1} parent=51 // pred_fallthru
          _
      $region52: #{tpu_custom_call.1} parent=5 // pred_fallthru
        _
    $region6: #{tpu_custom_call.1} parent=1 // loop_footer
      %s18 = sadd.s32 1, %s14
    $region7: #{tpu_custom_call.1} parent=1 // loop_footer_branch
      %13 = sbr.rel target = $region3
    $region8: #{tpu_custom_call.1} parent=1 // loop_exit
      _
    %371 = vsyncpa [#allocation6], 1
    %s372 = scalar_lea.sflag [#allocation6], 1
    %373 = vsyncpa %s372, 1
    %374 = vsyncpa [#allocation8], 1
    %s375 = scalar_lea.sflag [#allocation8], 1
    %376 = vsyncpa %s375, 1

</llo_original>
